<compile_context>
chip_gen: v7x
topology: tpu7x:2x2x1
jax: 0.10.0
libtpu: 0.0.40
codegen_flags: <defaults>
</compile_context>

<pallas_src>
import functools

import jax
import jax.numpy as jnp
from jax.experimental import pallas as pl
from jax.experimental.pallas import tpu as pltpu


def _tpc_rollout_kernel(z0_ref, wr_t_ref, wout_t_ref, z_out_ref, x_out_ref,
                        *, num_steps, mxu_dtype):
    """Fused T-step rollout for one batch block.

    z0_ref    : (bb, H)     initial hidden state for this batch block
    wr_t_ref  : (H, H)      Wr.weight^T  (MXU-native [K, N] layout)
    wout_t_ref: (H, O)      Wout.weight^T
    z_out_ref : (bb, T*H)   lane-dense slab of per-step pred_z
    x_out_ref : (bb, T*O)   lane-dense slab of per-step pred_x
    """
    wr_t = wr_t_ref[...]        # resident for the whole rollout
    wout_t = wout_t_ref[...]

    z = z0_ref[...].astype(jnp.float32)   # recurrence carry (vregs, f32)

    z_cols = []
    x_cols = []
    for _ in range(num_steps):             # statically unrolled (small T)
        h = jnp.tanh(z).astype(mxu_dtype)
        # pred_z = tanh(z) @ Wr^T  : plain [M,K]x[K,N] MXU contraction
        pred_z = jnp.dot(h, wr_t, preferred_element_type=jnp.float32)
        hx = jnp.tanh(pred_z).astype(mxu_dtype)
        # pred_x = tanh(pred_z) @ Wout^T
        pred_x = jnp.dot(hx, wout_t, preferred_element_type=jnp.float32)
        z_cols.append(pred_z)
        x_cols.append(pred_x)
        z = pred_z                          # prev_z <- pred_z

    # One lane-dense store per output (T*H / T*O lanes), instead of T masked
    # sub-128-lane stores.
    z_out_ref[...] = jnp.concatenate(z_cols, axis=-1).astype(z_out_ref.dtype)
    x_out_ref[...] = jnp.concatenate(x_cols, axis=-1).astype(x_out_ref.dtype)


@functools.partial(jax.jit,
                   static_argnames=("num_steps", "batch_block", "mxu_dtype"))
def multilayer_tpc_rollout(prev_z, wr_weight, wout_weight, *,
                           num_steps=1, batch_block=None,
                           mxu_dtype="float32"):
    """Fused multi-step rollout of MultilayertPC.forward.

    prev_z      : (B, H)  initial hidden state
    wr_weight   : (H, H)  torch nn.Linear layout (out_features, in_features)
    wout_weight : (O, H)  torch nn.Linear layout (out_features, in_features)
    num_steps   : T       rollout length (T=1 == the module's forward)
    batch_block : bb      optional batch block size (grid axis marked
                          "parallel"; shards across TensorCores on v7x)
    mxu_dtype   : dtype for the matmul operands ("float32" exact parity with
                  the module, "bfloat16" for MXU-native throughput; carry,
                  tanh and accumulation stay f32 either way)

    Returns (pred_z, pred_x) stacked over time: (T, B, H), (T, B, O).
    """
    B, H = prev_z.shape
    O = wout_weight.shape[0]
    T = int(num_steps)
    bb = B if batch_block is None else int(batch_block)
    assert B % bb == 0, "batch_block must divide batch size"
    nb = B // bb
    out_dtype = prev_z.dtype
    mx = jnp.dtype(mxu_dtype)

    # One-time weight transposes (and optional bf16 cast) in the wrapper —
    # amortized over all T steps, keeps the per-step dots MXU-native.
    wr_t = wr_weight.T.astype(mx)        # (H, H)
    wout_t = wout_weight.T.astype(mx)    # (H, O)

    flops = 2 * T * B * H * (H + O)            # two matmuls per step
    transcendentals = 2 * T * B * H            # two tanh's per step
    bytes_accessed = (
        prev_z.size * prev_z.dtype.itemsize
        + wr_t.size * wr_t.dtype.itemsize
        + wout_t.size * wout_t.dtype.itemsize
        + T * B * (H + O) * jnp.dtype(out_dtype).itemsize)

    grid_spec = pltpu.PrefetchScalarGridSpec(
        num_scalar_prefetch=0,
        grid=(nb,),
        in_specs=[
            pl.BlockSpec((bb, H), lambda b: (b, 0)),      # z0 batch block
            pl.BlockSpec((H, H), lambda b: (0, 0)),       # Wr^T   (resident)
            pl.BlockSpec((H, O), lambda b: (0, 0)),       # Wout^T (resident)
        ],
        out_specs=(
            pl.BlockSpec((bb, T * H), lambda b: (b, 0)),  # lane-dense slab
            pl.BlockSpec((bb, T * O), lambda b: (b, 0)),  # lane-dense slab
        ),
    )

    z_slab, x_slab = pl.pallas_call(
        functools.partial(_tpc_rollout_kernel, num_steps=T, mxu_dtype=mx),
        out_shape=(
            jax.ShapeDtypeStruct((B, T * H), out_dtype),
            jax.ShapeDtypeStruct((B, T * O), out_dtype),
        ),
        grid_spec=grid_spec,
        compiler_params=pltpu.CompilerParams(
            # Batch blocks are independent rollouts -> parallel (megacore).
            dimension_semantics=("parallel",),
        ),
        cost_estimate=pl.CostEstimate(
            flops=flops,
            transcendentals=transcendentals,
            bytes_accessed=bytes_accessed,
        ),
    )(prev_z, wr_t, wout_t)

    # Slab -> (T, B, H)/(T, B, O). Pure layout plumbing outside the kernel.
    pred_z = z_slab.reshape(B, T, H).transpose(1, 0, 2)
    pred_x = x_slab.reshape(B, T, O).transpose(1, 0, 2)
    return pred_z, pred_x


def multilayer_tpc_forward(prev_z, wr_weight, wout_weight):
    """Single-step forward, identical semantics to MultilayertPC.forward."""
    pred_z, pred_x = multilayer_tpc_rollout(
        prev_z, wr_weight, wout_weight, num_steps=1)
    return pred_z[0], pred_x[0]


if __name__ == "__main__":
    # Small shapes consistent with the module: batch=8, hidden=32, output=16.
    B, H, O = 8, 32, 16
    T = 8  # fused rollout length (recall_seq-style offline recurrence)

    key = jax.random.PRNGKey(0)
    k_z, k_wr, k_wout, k_z2 = jax.random.split(key, 4)

    prev_z = jax.random.normal(k_z, (B, H), dtype=jnp.float32)
    bound = 1.0 / (H ** 0.5)
    wr_weight = jax.random.uniform(k_wr, (H, H), minval=-bound, maxval=bound,
                                   dtype=jnp.float32)
    wout_weight = jax.random.uniform(k_wout, (O, H), minval=-bound,
                                     maxval=bound, dtype=jnp.float32)

    # --- single-step forward (module semantics) ---
    pred_z, pred_x = multilayer_tpc_forward(prev_z, wr_weight, wout_weight)
    jax.block_until_ready((pred_z, pred_x))
    ref_z = jnp.tanh(prev_z) @ wr_weight.T
    ref_x = jnp.tanh(ref_z) @ wout_weight.T
    assert jnp.allclose(pred_z, ref_z, atol=1e-5, rtol=1e-5)
    assert jnp.allclose(pred_x, ref_x, atol=1e-5, rtol=1e-5)

    # --- fused T-step rollout in a single grid step (f32, exact) ---
    zs, xs = multilayer_tpc_rollout(prev_z, wr_weight, wout_weight,
                                    num_steps=T)
    jax.block_until_ready((zs, xs))
    z_ref = prev_z
    zs_ref, xs_ref = [], []
    for t in range(T):
        z_ref = jnp.tanh(z_ref) @ wr_weight.T
        x_ref = jnp.tanh(z_ref) @ wout_weight.T
        zs_ref.append(z_ref)
        xs_ref.append(x_ref)
    zs_ref = jnp.stack(zs_ref)
    xs_ref = jnp.stack(xs_ref)
    assert jnp.allclose(zs, zs_ref, atol=1e-4, rtol=1e-4)
    assert jnp.allclose(xs, xs_ref, atol=1e-4, rtol=1e-4)

    # --- bf16 MXU operands, f32 carry/accumulation (loose tolerance) ---
    zs_bf, xs_bf = multilayer_tpc_rollout(prev_z, wr_weight, wout_weight,
                                          num_steps=T, mxu_dtype="bfloat16")
    jax.block_until_ready((zs_bf, xs_bf))
    assert zs_bf.shape == (T, B, H) and xs_bf.shape == (T, B, O)
    assert float(jnp.max(jnp.abs(zs_bf - zs_ref))) < 0.1
    assert float(jnp.max(jnp.abs(xs_bf - xs_ref))) < 0.1

    # --- parallel batch-block grid axis (shards across TCs on v7x) ---
    B2 = 16
    prev_z2 = jax.random.normal(k_z2, (B2, H), dtype=jnp.float32)
    zs2, xs2 = multilayer_tpc_rollout(prev_z2, wr_weight, wout_weight,
                                      num_steps=T, batch_block=8)
    jax.block_until_ready((zs2, xs2))
    z_ref2 = prev_z2
    for t in range(T):
        z_ref2 = jnp.tanh(z_ref2) @ wr_weight.T
        x_ref2 = jnp.tanh(z_ref2) @ wout_weight.T
        assert jnp.allclose(zs2[t], z_ref2, atol=1e-4, rtol=1e-4), t
        assert jnp.allclose(xs2[t], x_ref2, atol=1e-4, rtol=1e-4), t

    # TODO(synk): training/inference dynamics (Adam, inference iterations) are
    # host-side loops in the PyTorch module and are out of scope for this kernel.
    print("KERNEL_OK")
</pallas_src>

<mosaic_0001>
module attributes {stable_mosaic.version = 11 : i64} {
  func.func @_tpc_rollout_kernel(%arg0: i32, %arg1: memref<8x32xf32, #tpu.memory_space<vmem>>, %arg2: memref<32x32xf32, #tpu.memory_space<vmem>>, %arg3: memref<32x16xf32, #tpu.memory_space<vmem>>, %arg4: memref<8x32xf32, #tpu.memory_space<vmem>>, %arg5: memref<8x16xf32, #tpu.memory_space<vmem>>) attributes {dimension_semantics = [#tpu.dimension_semantics<parallel>], iteration_bounds = array<i64: 1>, scalar_prefetch = 0 : i64, scratch_operands = 0 : i64, tpu.core_type = #tpu.core_type<tc>, window_params = [{transform_indices = @transform_0, window_bounds = array<i64: 8, 32>}, {pipeline_mode = #tpu.pipeline_mode<synchronous>, transform_indices = @transform_1, window_bounds = array<i64: 32, 32>}, {pipeline_mode = #tpu.pipeline_mode<synchronous>, transform_indices = @transform_2, window_bounds = array<i64: 32, 16>}, {transform_indices = @transform_3, window_bounds = array<i64: 8, 32>}, {transform_indices = @transform_4, window_bounds = array<i64: 8, 16>}]} {
    %c0 = arith.constant 0 : index
    %c0_0 = arith.constant 0 : index
    %0 = vector.load %arg2[%c0, %c0_0] : memref<32x32xf32, #tpu.memory_space<vmem>>, vector<32x32xf32>
    %c0_1 = arith.constant 0 : index
    %c0_2 = arith.constant 0 : index
    %1 = vector.load %arg3[%c0_1, %c0_2] : memref<32x16xf32, #tpu.memory_space<vmem>>, vector<32x16xf32>
    %c0_3 = arith.constant 0 : index
    %c0_4 = arith.constant 0 : index
    %2 = vector.load %arg1[%c0_3, %c0_4] : memref<8x32xf32, #tpu.memory_space<vmem>>, vector<8x32xf32>
    %3 = math.tanh %2 : vector<8x32xf32>
    %cst = arith.constant dense<0.000000e+00> : vector<8x32xf32>
    %4 = tpu.matmul %3, %0, %cst {dimension_numbers = #tpu.dot_dimension_numbers<[1], [0], [0], [1], [0, 0, 1, 1], [], []>} : vector<8x32xf32>, vector<32x32xf32>, vector<8x32xf32> -> vector<8x32xf32>
    %5 = math.tanh %4 : vector<8x32xf32>
    %cst_5 = arith.constant dense<0.000000e+00> : vector<8x16xf32>
    %6 = tpu.matmul %5, %1, %cst_5 {dimension_numbers = #tpu.dot_dimension_numbers<[1], [0], [0], [1], [0, 0, 1, 1], [], []>} : vector<8x32xf32>, vector<32x16xf32>, vector<8x16xf32> -> vector<8x16xf32>
    %c0_6 = arith.constant 0 : index
    %c0_7 = arith.constant 0 : index
    %7 = vector.load %arg4[%c0_6, %c0_7] : memref<8x32xf32, #tpu.memory_space<vmem>>, vector<8x32xf32>
    tpu.vector_store %arg4[%c0_6, %c0_7], %4 {strides = array<i32>} : memref<8x32xf32, #tpu.memory_space<vmem>>, vector<8x32xf32>,
    %c0_8 = arith.constant 0 : index
    %c0_9 = arith.constant 0 : index
    %8 = vector.load %arg5[%c0_8, %c0_9] : memref<8x16xf32, #tpu.memory_space<vmem>>, vector<8x16xf32>
    tpu.vector_store %arg5[%c0_8, %c0_9], %6 {strides = array<i32>} : memref<8x16xf32, #tpu.memory_space<vmem>>, vector<8x16xf32>,
    return
  }
  func.func @transform_0(%arg0: i32) -> (i32, i32) {
    %c0_i32 = arith.constant 0 : i32
    %c0_i32_0 = arith.constant 0 : i32
    return %arg0, %c0_i32 : i32, i32
  }
  func.func @transform_1(%arg0: i32) -> (i32, i32) {
    %c0_i32 = arith.constant 0 : i32
    %c0_i32_0 = arith.constant 0 : i32
    %c0_i32_1 = arith.constant 0 : i32
    return %c0_i32, %c0_i32_0 : i32, i32
  }
  func.func @transform_2(%arg0: i32) -> (i32, i32) {
    %c0_i32 = arith.constant 0 : i32
    %c0_i32_0 = arith.constant 0 : i32
    %c0_i32_1 = arith.constant 0 : i32
    return %c0_i32, %c0_i32_0 : i32, i32
  }
  func.func @transform_3(%arg0: i32) -> (i32, i32) {
    %c0_i32 = arith.constant 0 : i32
    %c0_i32_0 = arith.constant 0 : i32
    return %arg0, %c0_i32 : i32, i32
  }
  func.func @transform_4(%arg0: i32) -> (i32, i32) {
    %c0_i32 = arith.constant 0 : i32
    %c0_i32_0 = arith.constant 0 : i32
    return %arg0, %c0_i32 : i32, i32
  }
}

</mosaic_0001>

<llo_original>
// kernel: multilayer_tpc_rollout.1
$region0: #{multilayer_tpc_rollout.1}
  #allocation0 [shape = 'u32[]', space=smem, size = 0x4, offset = 0x4, fixed_abs, tag = 'smem constant byte address 0x4 - core index']
  #allocation1 [shape = 'u32[144,128]{1,0:T(1,128)}', space=vmem, size = 0x12000, scoped, tag = 'internal scratch']
  %s0 = inlined_call_operand.vmem [shape: f32[8,32], index: 0, kind: input, shape index: {}]
  %s1 = inlined_call_operand.vmem [shape: f32[32,32], index: 1, kind: input, shape index: {}]
  %s2 = inlined_call_operand.vmem [shape: f32[32,16], index: 2, kind: input, shape index: {}]
  %s3 = inlined_call_operand.hbm [shape: f32[8,32], index: 3, kind: output, shape index: {0}]
  %s4 = inlined_call_operand.hbm [shape: f32[8,16], index: 4, kind: output, shape index: {1}]
  %5 = xla_tuple %s3, %s4
  %s6 = sld [smem:[#allocation0]]
  $region30: #{multilayer_tpc_rollout.1} parent=0
    _
  %s8 = ssub.s32 1, %s6
  %s9 = scalar_select 0, %s8, %s6
  $region1: #{multilayer_tpc_rollout.1} parent=0
    #allocation2 [shape = 'u8[4096]{0}', space=vmem, size = 0x1000, scoped, tag = 'output window, operand 0, single buffered']
    #allocation3 [shape = 's32[1]{0}', space=sflag, size = 0x4, scoped, tag = 'scoped memory for multilayer_tpc_rollout.1']
    #allocation4 [shape = 'u8[4096]{0}', space=vmem, size = 0x1000, scoped, tag = 'output window, operand 1, single buffered']
    #allocation5 [shape = 's32[1]{0}', space=sflag, size = 0x4, scoped, tag = 'scoped memory for multilayer_tpc_rollout.1']
    %10 = vsyncpa [#allocation3], 0
    %11 = vsyncpa [#allocation5], 0
    // Predicated region
    $region2: #{multilayer_tpc_rollout.1} parent=1 // pred_check
      _
    $region3: #{multilayer_tpc_rollout.1} parent=1 // pred_check_branch
      %13 = sbr.rel (0) target = $region5
    $region4: #{multilayer_tpc_rollout.1} parent=1 // pred_region
      _
    $region5: #{multilayer_tpc_rollout.1} parent=1 // pred_fallthru
      _
    // Predicated region
    $region6: #{multilayer_tpc_rollout.1} parent=1 // pred_check
      _
    $region7: #{multilayer_tpc_rollout.1} parent=1 // pred_check_branch
      %15 = sbr.rel (0) target = $region9
    $region8: #{multilayer_tpc_rollout.1} parent=1 // pred_region
      _
    $region9: #{multilayer_tpc_rollout.1} parent=1 // pred_fallthru
      _
    // Predicated region
    $region10: #{multilayer_tpc_rollout.1} parent=1 // pred_check
      _
    $region11: #{multilayer_tpc_rollout.1} parent=1 // pred_check_branch
      %17 = sbr.rel (0) target = $region13
    $region12: #{multilayer_tpc_rollout.1} parent=1 // pred_region
      _
    $region13: #{multilayer_tpc_rollout.1} parent=1 // pred_fallthru
      _
    %v18 = vld [vmem:[%s1] sm:$0xff]
    %v19 = vld [vmem:[%s1 + $0x8] sm:$0xff]
    %v20 = vld [vmem:[%s1 + $0x10] sm:$0xff]
    %v21 = vld [vmem:[%s1 + $0x18] sm:$0xff]
    %v22 = vld [vmem:[%s2] sm:$0xff]
    %v23 = vld [vmem:[%s2 + $0x8] sm:$0xff]
    %v24 = vld [vmem:[%s2 + $0x10] sm:$0xff]
    %v25 = vld [vmem:[%s2 + $0x18] sm:$0xff]
    %v26 = vld [vmem:[%s0] sm:$0xff]
    %v27 = vtanh.pop %v26
    %vm28 = vcmask 261120
    %v30 = vsel %vm28, %v27, 0
    %32 = vmatprep.subr.mxu0 0.0
    %33 = vmatpush1.msra.mxu0 %v18
    %34 = vmatprep.subr.mxu0 0.0
    %35 = vmatpush1.msra.mxu0 %v19
    %36 = vmatprep.subr.mxu0 0.0
    %37 = vmatpush1.msra.mxu0 %v20
    %38 = vmatprep.subr.mxu0 0.0
    %39 = vmatpush1.msra.mxu0 %v21
    %40 = vmatprep.subr.mxu0 0.0
    %41 = vmatpush1.msra.mxu0 0.0
    %42 = vmatprep.subr.mxu0 0.0
    %43 = vmatpush1.msra.mxu0 0.0
    %44 = vmatprep.subr.mxu0 0.0
    %45 = vmatpush1.msra.mxu0 0.0
    %46 = vmatprep.subr.mxu0 0.0
    %47 = vmatpush1.msra.mxu0 0.0
    %48 = vmatprep.subr.mxu0 0.0
    %49 = vmatpush1.msra.mxu0 0.0
    %50 = vmatprep.subr.mxu0 0.0
    %51 = vmatpush1.msra.mxu0 0.0
    %52 = vmatprep.subr.mxu0 0.0
    %53 = vmatpush1.msra.mxu0 0.0
    %54 = vmatprep.subr.mxu0 0.0
    %55 = vmatpush1.msra.mxu0 0.0
    %56 = vmatprep.subr.mxu0 0.0
    %57 = vmatpush1.msra.mxu0 0.0
    %58 = vmatprep.subr.mxu0 0.0
    %59 = vmatpush1.msra.mxu0 0.0
    %60 = vmatprep.subr.mxu0 0.0
    %61 = vmatpush1.msra.mxu0 0.0
    %62 = vmatprep.subr.mxu0 0.0
    %63 = vmatpush1.msra.mxu0 0.0
    %64 = vmatprep.subr.mxu0 0.0
    %65 = vmatpush1.msra.mxu0 0.0
    %66 = vmatprep.subr.mxu0 0.0
    %67 = vmatpush1.msra.mxu0 0.0
    %68 = vmatprep.subr.mxu0 0.0
    %69 = vmatpush1.msra.mxu0 0.0
    %70 = vmatprep.subr.mxu0 0.0
    %71 = vmatpush1.msra.mxu0 0.0
    %72 = vmatprep.subr.mxu0 0.0
    %73 = vmatpush1.msra.mxu0 0.0
    %74 = vmatprep.subr.mxu0 0.0
    %75 = vmatpush1.msra.mxu0 0.0
    %76 = vmatprep.subr.mxu0 0.0
    %77 = vmatpush1.msra.mxu0 0.0
    %78 = vmatprep.subr.mxu0 0.0
    %79 = vmatpush1.msra.mxu0 0.0
    %80 = vmatprep.subr.mxu0 0.0
    %81 = vmatpush1.msra.mxu0 0.0
    %82 = vmatprep.subr.mxu0 0.0
    %83 = vmatpush1.msra.mxu0 0.0
    %84 = vmatprep.subr.mxu0 0.0
    %85 = vmatpush1.msra.mxu0 0.0
    %86 = vmatprep.subr.mxu0 0.0
    %87 = vmatpush1.msra.mxu0 0.0
    %88 = vmatprep.subr.mxu0 0.0
    %89 = vmatpush1.msra.mxu0 0.0
    %90 = vmatprep.subr.mxu0 0.0
    %91 = vmatpush1.msra.mxu0 0.0
    %92 = vmatprep.subr.mxu0 0.0
    %93 = vmatpush1.msra.mxu0 0.0
    %94 = vmatprep.subr.mxu0 0.0
    %95 = vmatpush1.msra.mxu0 0.0
    %96 = vmatprep.mubr.f32.mxu0 0.0
    %97 = vmatmul.mubr.f32.gmra.mrb[0].mxu0 %v30
    %v98 = vpop.f32.mrb[0].mxu0
    %v99 = vadd.f32 0.0, %v98
    %v100 = vpop.f32.mrb[0].mxu0
    %101 = vdwg.mxu0
    %v102 = vtanh.pop %v99
    %v104 = vsel %vm28, %v102, 0
    %106 = vmatprep.subr.mxu0 0.0
    %107 = vmatpush1.msra.mxu0 %v22
    %108 = vmatprep.subr.mxu0 0.0
    %109 = vmatpush1.msra.mxu0 %v23
    %110 = vmatprep.subr.mxu0 0.0
    %111 = vmatpush1.msra.mxu0 %v24
    %112 = vmatprep.subr.mxu0 0.0
    %113 = vmatpush1.msra.mxu0 %v25
    %114 = vmatprep.subr.mxu0 0.0
    %115 = vmatpush1.msra.mxu0 0.0
    %116 = vmatprep.subr.mxu0 0.0
    %117 = vmatpush1.msra.mxu0 0.0
    %118 = vmatprep.subr.mxu0 0.0
    %119 = vmatpush1.msra.mxu0 0.0
    %120 = vmatprep.subr.mxu0 0.0
    %121 = vmatpush1.msra.mxu0 0.0
    %122 = vmatprep.subr.mxu0 0.0
    %123 = vmatpush1.msra.mxu0 0.0
    %124 = vmatprep.subr.mxu0 0.0
    %125 = vmatpush1.msra.mxu0 0.0
    %126 = vmatprep.subr.mxu0 0.0
    %127 = vmatpush1.msra.mxu0 0.0
    %128 = vmatprep.subr.mxu0 0.0
    %129 = vmatpush1.msra.mxu0 0.0
    %130 = vmatprep.subr.mxu0 0.0
    %131 = vmatpush1.msra.mxu0 0.0
    %132 = vmatprep.subr.mxu0 0.0
    %133 = vmatpush1.msra.mxu0 0.0
    %134 = vmatprep.subr.mxu0 0.0
    %135 = vmatpush1.msra.mxu0 0.0
    %136 = vmatprep.subr.mxu0 0.0
    %137 = vmatpush1.msra.mxu0 0.0
    %138 = vmatprep.subr.mxu0 0.0
    %139 = vmatpush1.msra.mxu0 0.0
    %140 = vmatprep.subr.mxu0 0.0
    %141 = vmatpush1.msra.mxu0 0.0
    %142 = vmatprep.subr.mxu0 0.0
    %143 = vmatpush1.msra.mxu0 0.0
    %144 = vmatprep.subr.mxu0 0.0
    %145 = vmatpush1.msra.mxu0 0.0
    %146 = vmatprep.subr.mxu0 0.0
    %147 = vmatpush1.msra.mxu0 0.0
    %148 = vmatprep.subr.mxu0 0.0
    %149 = vmatpush1.msra.mxu0 0.0
    %150 = vmatprep.subr.mxu0 0.0
    %151 = vmatpush1.msra.mxu0 0.0
    %152 = vmatprep.subr.mxu0 0.0
    %153 = vmatpush1.msra.mxu0 0.0
    %154 = vmatprep.subr.mxu0 0.0
    %155 = vmatpush1.msra.mxu0 0.0
    %156 = vmatprep.subr.mxu0 0.0
    %157 = vmatpush1.msra.mxu0 0.0
    %158 = vmatprep.subr.mxu0 0.0
    %159 = vmatpush1.msra.mxu0 0.0
    %160 = vmatprep.subr.mxu0 0.0
    %161 = vmatpush1.msra.mxu0 0.0
    %162 = vmatprep.subr.mxu0 0.0
    %163 = vmatpush1.msra.mxu0 0.0
    %164 = vmatprep.subr.mxu0 0.0
    %165 = vmatpush1.msra.mxu0 0.0
    %166 = vmatprep.subr.mxu0 0.0
    %167 = vmatpush1.msra.mxu0 0.0
    %168 = vmatprep.subr.mxu0 0.0
    %169 = vmatpush1.msra.mxu0 0.0
    %170 = vmatprep.mubr.f32.mxu0 0.0
    %171 = vmatmul.mubr.f32.gmra.mrb[0].mxu0 %v104
    %v172 = vpop.f32.mrb[0].mxu0
    %v173 = vadd.f32 0.0, %v172
    %v174 = vpop.f32.mrb[0].mxu0
    %175 = vdwg.mxu0
    %176 = vst.msk [vmem:[#allocation2] sm:$0xff] %vm28, %v99
    %vm177 = vcmask 130048
    %178 = vst.msk [vmem:[#allocation4] sm:$0xff] %vm177, %v173
    // Predicated region
    $region14: #{multilayer_tpc_rollout.1} parent=1 // pred_check
      _
    $region15: #{multilayer_tpc_rollout.1} parent=1 // pred_check_branch
      %180 = sbr.rel (0) target = $region17
    $region16: #{multilayer_tpc_rollout.1} parent=1 // pred_region
      %s182 = ssub.s32 128, 128
      %183 = vsyncadd [#allocation3], %s182
      %s185 = sshll.u32 [#allocation2], 4
      %s186 = int_to_ptr.vmem [resolvable:$true] %s185
      %188 = dma.vmem_to_hbm [thread:$0]  %s186, 128, %s3, [#allocation3]
    $region17: #{multilayer_tpc_rollout.1} parent=1 // pred_fallthru
      _
    // Predicated region
    $region18: #{multilayer_tpc_rollout.1} parent=1 // pred_check
      _
    $region19: #{multilayer_tpc_rollout.1} parent=1 // pred_check_branch
      %190 = sbr.rel (0) target = $region21
    $region20: #{multilayer_tpc_rollout.1} parent=1 // pred_region
      %s192 = ssub.s32 128, 128
      %193 = vsyncadd [#allocation5], %s192
      %s195 = sshll.u32 [#allocation4], 4
      %s196 = int_to_ptr.vmem [resolvable:$true] %s195
      %198 = dma.vmem_to_hbm [thread:$0]  %s196, 128, %s4, [#allocation5]
    $region21: #{multilayer_tpc_rollout.1} parent=1 // pred_fallthru
      _
    // Predicated region
    $region22: #{multilayer_tpc_rollout.1} parent=1 // pred_check
      _
    $region23: #{multilayer_tpc_rollout.1} parent=1 // pred_check_branch
      %200 = sbr.rel (0) target = $region25
    $region24: #{multilayer_tpc_rollout.1} parent=1 // pred_region
      %201 = dma.done [#allocation3], 128
    $region25: #{multilayer_tpc_rollout.1} parent=1 // pred_fallthru
      _
    // Predicated region
    $region26: #{multilayer_tpc_rollout.1} parent=1 // pred_check
      _
    $region27: #{multilayer_tpc_rollout.1} parent=1 // pred_check_branch
      %203 = sbr.rel (0) target = $region29
    $region28: #{multilayer_tpc_rollout.1} parent=1 // pred_region
      %204 = dma.done [#allocation5], 128
    $region29: #{multilayer_tpc_rollout.1} parent=1 // pred_fallthru
      _
    %205 = vsyncpa [#allocation3], 1
    %206 = vsyncpa [#allocation5], 1

</llo_original>
